<compile_context>
chip_gen: v6e
topology: v6e:2x2x1
jax: 0.10.0
libtpu: 0.0.40
codegen_flags: <defaults>
</compile_context>

<pallas_src>
import jax
import jax.numpy as jnp
from jax.experimental import pallas as pl
from jax.experimental.pallas import tpu as pltpu


# ----------------------------------------------------------------------------
# Fused kernel: one grid step == one decoder time step.
# ----------------------------------------------------------------------------
def decoder_step_kernel(x_ref, enc_ref, h0_ref, c0_ref, tbl_ref,
                        we_ref, be_ref, wbig_ref, bg_ref, wfc_ref, bfc_ref,
                        pred_ref, hout_ref, cout_ref,
                        h_sc, c_sc):
    # Shapes (per grid step t):
    #   x_ref    (N, 1)       int32  token ids for step t
    #   enc_ref  (N, S, 2H)   f32    batch-major encoder states (resident)
    #   h0_ref   (N, H)       f32    initial hidden (used only at t == 0)
    #   c0_ref   (N, H)       f32    initial cell   (used only at t == 0)
    #   tbl_ref  (V, E)       bf16   embedding table (resident)
    #   we_ref   (1, 3H)      f32    energy weight row ([h | enc] order)
    #   be_ref   (1, 1)       f32    energy bias
    #   wbig_ref (2H+E+H, 4H) bf16   [w_ih ; w_hh] stacked (resident)
    #   bg_ref   (1, 4H)      f32    b_ih + b_hh
    #   wfc_ref  (H, O)       bf16   output projection (resident)
    #   bfc_ref  (1, O)       f32
    #   pred_ref (N, O)       f32    per-step prediction (written each step)
    #   hout_ref (N, H)       f32    final hidden (resident output)
    #   cout_ref (N, H)       f32    final cell   (resident output)
    #   h_sc/c_sc (N, H)      f32    carried LSTM state (VMEM scratch)
    N, S, H2 = enc_ref.shape
    H = h0_ref.shape[1]
    V, E = tbl_ref.shape

    t = pl.program_id(0)

    @pl.when(t == 0)
    def _():
        h_sc[...] = h0_ref[...]
        c_sc[...] = c0_ref[...]

    h = h_sc[...]                                            # (N, H)  f32
    c = c_sc[...]                                            # (N, H)  f32
    enc = enc_ref[...]                                       # (N, S, 2H) f32

    # ---- embedding lookup fused as a one-hot (N,V)@(V,E) MXU matmul --------
    ids = x_ref[...]                                         # (N, 1) int32
    vocab = jax.lax.broadcasted_iota(jnp.int32, (N, V), 1)
    onehot = jnp.where(ids == vocab, 1.0, 0.0).astype(jnp.bfloat16)   # (N, V)
    emb = jnp.dot(onehot, tbl_ref[...],
                  preferred_element_type=jnp.float32)        # (N, E) f32

    # ---- attention energy: VPU multiply + lane reduce, kept 2-D (N, S) -----
    we_h = we_ref[:, :H]                                     # (1, H)
    we_e = we_ref[:, H:]                                     # (1, 2H)
    e_h = jnp.sum(h * we_h, axis=1, keepdims=True) + be_ref[...]      # (N, 1)
    e_e = jnp.sum(enc * we_e, axis=2)                        # (N, S)
    energy = jnp.maximum(e_e + e_h, 0.0)                     # relu

    # softmax over the sequence axis (lanes)
    m = jnp.max(energy, axis=1, keepdims=True)
    ex = jnp.exp(energy - m)
    denom = jnp.sum(ex, axis=1, keepdims=True)
    attn = ex * pl.reciprocal(denom, approx=True)            # (N, S)

    # context[n, :] = sum_s attn[n, s] * enc[n, s, :]
    context = jnp.sum(attn[:, :, None] * enc, axis=1)        # (N, 2H) f32

    # ---- one LSTM step: single fused gate matmul ---------------------------
    # lhs = [context | emb | h] against [w_ih ; w_hh]; one MXU push/pop
    lhs = jnp.concatenate([context, emb, h], axis=1).astype(jnp.bfloat16)
    gates = jnp.dot(lhs, wbig_ref[...],
                    preferred_element_type=jnp.float32) + bg_ref[...]  # (N, 4H)
    i_g = jax.nn.sigmoid(gates[:, 0 * H:1 * H])
    f_g = jax.nn.sigmoid(gates[:, 1 * H:2 * H])
    g_g = jnp.tanh(gates[:, 2 * H:3 * H])
    o_g = jax.nn.sigmoid(gates[:, 3 * H:4 * H])
    c_new = f_g * c + i_g * g_g
    h_new = o_g * jnp.tanh(c_new)

    # ---- output projection --------------------------------------------------
    pred = jnp.dot(h_new.astype(jnp.bfloat16), wfc_ref[...],
                   preferred_element_type=jnp.float32) + bfc_ref[...]  # (N, O)

    # ---- carry state; write lane-0-aligned outputs --------------------------
    h_sc[...] = h_new
    c_sc[...] = c_new
    pred_ref[...] = pred
    hout_ref[...] = h_new
    cout_ref[...] = c_new


# ----------------------------------------------------------------------------
# One-time parameter layout prep (hoisted out of the per-step/per-decode path).
# ----------------------------------------------------------------------------
def prepare_params(params):
    H = params["w_hh"].shape[0]
    return {
        "tbl": params["embedding"].astype(jnp.bfloat16),                    # (V, E)
        "we": params["w_energy"].reshape(1, 3 * H),                         # (1, 3H)
        "be": params["b_energy"].reshape(1, 1),                             # (1, 1)
        "w_big": jnp.concatenate([params["w_ih"], params["w_hh"]],
                                 axis=0).astype(jnp.bfloat16),              # (2H+E+H, 4H)
        "bg": (params["b_ih"] + params["b_hh"]).reshape(1, 4 * H),          # (1, 4H)
        "w_fc": params["w_fc"].astype(jnp.bfloat16),                        # (H, O)
        "b_fc": params["b_fc"].reshape(1, -1),                              # (1, O)
    }


# ----------------------------------------------------------------------------
# Fused T-step decode: one pallas_call, grid=(T,), state carried in VMEM.
# ----------------------------------------------------------------------------
@jax.jit
def decoder_decode(xs, encoder_states, hidden, cell, prep):
    # xs: (T, N) int32 token ids (one row per decoder step, teacher-forced)
    T, N = xs.shape
    S, _, H2 = encoder_states.shape
    H = hidden.shape[-1]
    V, E = prep["tbl"].shape
    KBIG = prep["w_big"].shape[0]
    O = prep["w_fc"].shape[1]

    # per-decode (not per-step) layout prep
    enc = jnp.transpose(encoder_states, (1, 0, 2))           # (N, S, 2H) batch-major
    x3d = xs.reshape(T, N, 1).astype(jnp.int32)
    h0 = hidden[0]                                           # num_layers == 1
    c0 = cell[0]

    grid_spec = pltpu.PrefetchScalarGridSpec(
        num_scalar_prefetch=0,
        grid=(T,),
        in_specs=[
            pl.BlockSpec((None, N, 1), lambda t: (t, 0, 0)),     # x (per step)
            pl.BlockSpec((N, S, H2), lambda t: (0, 0, 0)),       # enc (resident)
            pl.BlockSpec((N, H), lambda t: (0, 0)),              # h0
            pl.BlockSpec((N, H), lambda t: (0, 0)),              # c0
            pl.BlockSpec((V, E), lambda t: (0, 0)),              # embedding table
            pl.BlockSpec((1, 3 * H), lambda t: (0, 0)),          # w_energy
            pl.BlockSpec((1, 1), lambda t: (0, 0)),              # b_energy
            pl.BlockSpec((KBIG, 4 * H), lambda t: (0, 0)),       # [w_ih ; w_hh]
            pl.BlockSpec((1, 4 * H), lambda t: (0, 0)),          # b_ih + b_hh
            pl.BlockSpec((H, O), lambda t: (0, 0)),              # w_fc
            pl.BlockSpec((1, O), lambda t: (0, 0)),              # b_fc
        ],
        out_specs=[
            pl.BlockSpec((None, N, O), lambda t: (t, 0, 0)),     # per-step preds
            pl.BlockSpec((N, H), lambda t: (0, 0)),              # final hidden
            pl.BlockSpec((N, H), lambda t: (0, 0)),              # final cell
        ],
        scratch_shapes=[pltpu.VMEM((N, H), jnp.float32),         # carried h
                        pltpu.VMEM((N, H), jnp.float32)],        # carried c
    )

    preds, h_new, c_new = pl.pallas_call(
        decoder_step_kernel,
        out_shape=(jax.ShapeDtypeStruct((T, N, O), jnp.float32),
                   jax.ShapeDtypeStruct((N, H), jnp.float32),
                   jax.ShapeDtypeStruct((N, H), jnp.float32)),
        grid_spec=grid_spec,
        compiler_params=pltpu.CompilerParams(
            dimension_semantics=("arbitrary",),          # steps carry LSTM state
            vmem_limit_bytes=32 * 1024 * 1024),          # explicit across v5e/v6e/v7x
    )(x3d, enc, h0, c0, prep["tbl"], prep["we"], prep["be"],
      prep["w_big"], prep["bg"], prep["w_fc"], prep["b_fc"])

    return preds, h_new[None], c_new[None], None         # attn=None (return_attn=False)


def decoder_forward(x, encoder_states, hidden, cell, prep):
    """Single decoder step == the PyTorch module's forward (T == 1 case)."""
    preds, h_new, c_new, _ = decoder_decode(x[None, :], encoder_states,
                                            hidden, cell, prep)
    return preds[0], h_new, c_new, None


# ----------------------------------------------------------------------------
# Pure-JAX reference (mirrors the PyTorch forward) for correctness checks.
# ----------------------------------------------------------------------------
def decoder_forward_ref(x, encoder_states, hidden, cell, params):
    emb = params["embedding"][x][None]                     # (1, N, E)
    S = encoder_states.shape[0]
    H = hidden.shape[-1]
    h_rep = jnp.tile(hidden, (S, 1, 1))                    # (S, N, H)
    cat = jnp.concatenate([h_rep, encoder_states], axis=2)               # (S, N, 3H)
    energy = jax.nn.relu(cat @ params["w_energy"] + params["b_energy"])  # (S, N, 1)
    attention = jax.nn.softmax(energy, axis=0)
    context = jnp.einsum("snk,snl->knl", attention, encoder_states)      # (1, N, 2H)
    rnn_in = jnp.concatenate([context, emb], axis=2)[0]                  # (N, 2H+E)
    gates = (rnn_in @ params["w_ih"] + params["b_ih"]
             + hidden[0] @ params["w_hh"] + params["b_hh"])
    i_g = jax.nn.sigmoid(gates[:, 0 * H:1 * H])
    f_g = jax.nn.sigmoid(gates[:, 1 * H:2 * H])
    g_g = jnp.tanh(gates[:, 2 * H:3 * H])
    o_g = jax.nn.sigmoid(gates[:, 3 * H:4 * H])
    c_new = f_g * cell[0] + i_g * g_g
    h_new = o_g * jnp.tanh(c_new)
    pred = h_new @ params["w_fc"] + params["b_fc"]
    return pred, h_new[None], c_new[None], None


if __name__ == "__main__":
    # Module hyperparameters (small, consistent with the forward pass).
    V = 32      # input_size (vocab)
    E = 16      # embedding_size
    H = 32      # hidden_size
    O = 32      # output_size
    N = 4       # batch
    S = 8       # encoder sequence length
    T = 6       # decode steps for the fused-loop demo
    # num_layers = 1, p = 0.0 (forward requires num_layers == 1; dropout is identity)

    key = jax.random.PRNGKey(0)
    ks = jax.random.split(key, 13)

    def u(k, shape, scale=0.1):
        return jax.random.uniform(k, shape, jnp.float32, -scale, scale)

    params = {
        "embedding": u(ks[0], (V, E)),
        # energy: nn.Linear(3H, 1) -> weight (1, 3H), stored transposed (3H, 1)
        "w_energy": u(ks[1], (3 * H, 1)),
        "b_energy": u(ks[2], (1, 1)),
        # LSTM(2H+E -> H): weight_ih (4H, 2H+E), weight_hh (4H, H), stored transposed
        "w_ih": u(ks[3], (2 * H + E, 4 * H)),
        "w_hh": u(ks[4], (H, 4 * H)),
        "b_ih": u(ks[5], (1, 4 * H)),
        "b_hh": u(ks[6], (1, 4 * H)),
        # fc: nn.Linear(H, O) -> weight (O, H), stored transposed (H, O)
        "w_fc": u(ks[7], (H, O)),
        "b_fc": u(ks[8], (1, O)),
    }
    prep = prepare_params(params)   # one-time weight layout prep (hoisted)

    x = jax.random.randint(ks[9], (N,), 0, V, dtype=jnp.int32)
    encoder_states = u(ks[10], (S, N, 2 * H), 1.0)
    hc = jax.random.split(ks[11], 2)
    hidden = u(hc[0], (1, N, H), 1.0)
    cell = u(hc[1], (1, N, H), 1.0)

    # --- single-step forward (the PyTorch module's forward) -----------------
    pred, h1, c1, attn = decoder_forward(x, encoder_states, hidden, cell, prep)
    jax.block_until_ready((pred, h1, c1))

    pred_r, h_r, c_r, _ = decoder_forward_ref(x, encoder_states, hidden, cell, params)
    assert pred.shape == (N, O) and h1.shape == (1, N, H) and c1.shape == (1, N, H)
    assert attn is None
    assert jnp.allclose(pred, pred_r, rtol=1e-2, atol=1e-2)
    assert jnp.allclose(h1, h_r, rtol=1e-2, atol=1e-2)
    assert jnp.allclose(c1, c_r, rtol=1e-2, atol=1e-2)

    # --- fused T-step decode: one pallas_call, state resident in VMEM -------
    xs = jax.random.randint(ks[12], (T, N), 0, V, dtype=jnp.int32)
    preds, hT, cT, _ = decoder_decode(xs, encoder_states, hidden, cell, prep)
    jax.block_until_ready((preds, hT, cT))

    h_acc, c_acc = hidden, cell
    preds_ref = []
    for t in range(T):
        p_t, h_acc, c_acc, _ = decoder_forward_ref(xs[t], encoder_states,
                                                   h_acc, c_acc, params)
        preds_ref.append(p_t)
    preds_ref = jnp.stack(preds_ref, axis=0)

    assert preds.shape == (T, N, O)
    assert jnp.allclose(preds, preds_ref, rtol=2e-2, atol=2e-2)
    assert jnp.allclose(hT, h_acc, rtol=2e-2, atol=2e-2)
    assert jnp.allclose(cT, c_acc, rtol=2e-2, atol=2e-2)

    print("KERNEL_OK")
</pallas_src>

<mosaic_0001>
module attributes {stable_mosaic.version = 11 : i64} {
  func.func @decoder_step_kernel(%arg0: i32, %arg1: memref<1x4x1xi32, #tpu.memory_space<vmem>>, %arg2: memref<4x8x64xf32, #tpu.memory_space<vmem>>, %arg3: memref<4x32xf32, #tpu.memory_space<vmem>>, %arg4: memref<4x32xf32, #tpu.memory_space<vmem>>, %arg5: memref<32x16xbf16, #tpu.memory_space<vmem>>, %arg6: memref<1x96xf32, #tpu.memory_space<vmem>>, %arg7: memref<1x1xf32, #tpu.memory_space<vmem>>, %arg8: memref<112x128xbf16, #tpu.memory_space<vmem>>, %arg9: memref<1x128xf32, #tpu.memory_space<vmem>>, %arg10: memref<32x32xbf16, #tpu.memory_space<vmem>>, %arg11: memref<1x32xf32, #tpu.memory_space<vmem>>, %arg12: memref<1x4x32xf32, #tpu.memory_space<vmem>>, %arg13: memref<4x32xf32, #tpu.memory_space<vmem>>, %arg14: memref<4x32xf32, #tpu.memory_space<vmem>>, %arg15: memref<4x32xf32, #tpu.memory_space<vmem>>, %arg16: memref<4x32xf32, #tpu.memory_space<vmem>>) attributes {dimension_semantics = [#tpu.dimension_semantics<arbitrary>], iteration_bounds = array<i64: 1>, scalar_prefetch = 0 : i64, scratch_operands = 2 : i64, tpu.core_type = #tpu.core_type<tc>, window_params = [{transform_indices = @transform_0, window_bounds = array<i64: 1, 4, 1>}, {pipeline_mode = #tpu.pipeline_mode<synchronous>, transform_indices = @transform_1, window_bounds = array<i64: 4, 8, 64>}, {pipeline_mode = #tpu.pipeline_mode<synchronous>, transform_indices = @transform_2, window_bounds = array<i64: 4, 32>}, {pipeline_mode = #tpu.pipeline_mode<synchronous>, transform_indices = @transform_3, window_bounds = array<i64: 4, 32>}, {pipeline_mode = #tpu.pipeline_mode<synchronous>, transform_indices = @transform_4, window_bounds = array<i64: 32, 16>}, {pipeline_mode = #tpu.pipeline_mode<synchronous>, transform_indices = @transform_5, window_bounds = array<i64: 1, 96>}, {pipeline_mode = #tpu.pipeline_mode<synchronous>, transform_indices = @transform_6, window_bounds = array<i64: 1, 1>}, {pipeline_mode = #tpu.pipeline_mode<synchronous>, transform_indices = @transform_7, window_bounds = array<i64: 112, 128>}, {pipeline_mode = #tpu.pipeline_mode<synchronous>, transform_indices = @transform_8, window_bounds = array<i64: 1, 128>}, {pipeline_mode = #tpu.pipeline_mode<synchronous>, transform_indices = @transform_9, window_bounds = array<i64: 32, 32>}, {pipeline_mode = #tpu.pipeline_mode<synchronous>, transform_indices = @transform_10, window_bounds = array<i64: 1, 32>}, {transform_indices = @transform_11, window_bounds = array<i64: 1, 4, 32>}, {pipeline_mode = #tpu.pipeline_mode<synchronous>, transform_indices = @transform_12, window_bounds = array<i64: 4, 32>}, {pipeline_mode = #tpu.pipeline_mode<synchronous>, transform_indices = @transform_13, window_bounds = array<i64: 4, 32>}]} {
    %c0_i32 = arith.constant 0 : i32
    %0 = arith.cmpi eq, %arg0, %c0_i32 : i32
    %1 = arith.extui %0 : i1 to i32
    %c0_i32_0 = arith.constant 0 : i32
    %2 = arith.cmpi ne, %1, %c0_i32_0 : i32
    scf.if %2 {
      %c0_49 = arith.constant 0 : index
      %c0_50 = arith.constant 0 : index
      %93 = vector.load %arg3[%c0_49, %c0_50] : memref<4x32xf32, #tpu.memory_space<vmem>>, vector<4x32xf32>
      %c0_51 = arith.constant 0 : index
      %c0_52 = arith.constant 0 : index
      %94 = vector.load %arg15[%c0_51, %c0_52] : memref<4x32xf32, #tpu.memory_space<vmem>>, vector<4x32xf32>
      tpu.vector_store %arg15[%c0_51, %c0_52], %93 {strides = array<i32>} : memref<4x32xf32, #tpu.memory_space<vmem>>, vector<4x32xf32>,
      %c0_53 = arith.constant 0 : index
      %c0_54 = arith.constant 0 : index
      %95 = vector.load %arg4[%c0_53, %c0_54] : memref<4x32xf32, #tpu.memory_space<vmem>>, vector<4x32xf32>
      %c0_55 = arith.constant 0 : index
      %c0_56 = arith.constant 0 : index
      %96 = vector.load %arg16[%c0_55, %c0_56] : memref<4x32xf32, #tpu.memory_space<vmem>>, vector<4x32xf32>
      tpu.vector_store %arg16[%c0_55, %c0_56], %95 {strides = array<i32>} : memref<4x32xf32, #tpu.memory_space<vmem>>, vector<4x32xf32>,
    } else {
    }
    %c0 = arith.constant 0 : index
    %c0_1 = arith.constant 0 : index
    %3 = vector.load %arg15[%c0, %c0_1] : memref<4x32xf32, #tpu.memory_space<vmem>>, vector<4x32xf32>
    %c0_2 = arith.constant 0 : index
    %c0_3 = arith.constant 0 : index
    %4 = vector.load %arg16[%c0_2, %c0_3] : memref<4x32xf32, #tpu.memory_space<vmem>>, vector<4x32xf32>
    %c0_4 = arith.constant 0 : index
    %c0_5 = arith.constant 0 : index
    %c0_6 = arith.constant 0 : index
    %5 = vector.load %arg2[%c0_4, %c0_5, %c0_6] : memref<4x8x64xf32, #tpu.memory_space<vmem>>, vector<4x8x64xf32>
    %c0_7 = arith.constant 0 : index
    %c0_8 = arith.constant 0 : index
    %c0_9 = arith.constant 0 : index
    %6 = vector.load %arg1[%c0_7, %c0_8, %c0_9] : memref<1x4x1xi32, #tpu.memory_space<vmem>>, vector<1x4x1xi32>
    %7 = vector.shape_cast %6 : vector<1x4x1xi32> to vector<4x1xi32>
    %8 = tpu.iota {dimensions = array<i32: 1>} : vector<4x32xi32>
    %9 = vector.broadcast %7 : vector<4x1xi32> to vector<4x32xi32>
    %10 = arith.cmpi eq, %9, %8 : vector<4x32xi32>
    %cst = arith.constant 1.000000e+00 : f32
    %cst_10 = arith.constant 0.000000e+00 : f32
    %11 = vector.broadcast %cst : f32 to vector<4x32xf32>
    %12 = vector.broadcast %cst_10 : f32 to vector<4x32xf32>
    %13 = arith.select %10, %11, %12 : vector<4x32xi1>, vector<4x32xf32>
    %14 = arith.truncf %13 : vector<4x32xf32> to vector<4x32xbf16>
    %c0_11 = arith.constant 0 : index
    %c0_12 = arith.constant 0 : index
    %15 = vector.load %arg5[%c0_11, %c0_12] : memref<32x16xbf16, #tpu.memory_space<vmem>>, vector<32x16xbf16>
    %cst_13 = arith.constant dense<0.000000e+00> : vector<4x16xf32>
    %16 = tpu.matmul %14, %15, %cst_13 {dimension_numbers = #tpu.dot_dimension_numbers<[1], [0], [0], [1], [0, 0, 1, 1], [], []>} : vector<4x32xbf16>, vector<32x16xbf16>, vector<4x16xf32> -> vector<4x16xf32>
    %c0_14 = arith.constant 0 : index
    %c0_15 = arith.constant 0 : index
    %17 = vector.load %arg6[%c0_14, %c0_15] : memref<1x96xf32, #tpu.memory_space<vmem>>, vector<1x32xf32>
    %c0_16 = arith.constant 0 : index
    %c32 = arith.constant 32 : index
    %18 = vector.load %arg6[%c0_16, %c32] : memref<1x96xf32, #tpu.memory_space<vmem>>, vector<1x64xf32>
    %19 = vector.broadcast %17 : vector<1x32xf32> to vector<4x32xf32>
    %20 = arith.mulf %3, %19 : vector<4x32xf32>
    %cst_17 = arith.constant dense<0.000000e+00> : vector<4xf32>
    %21 = vector.multi_reduction <add>, %20, %cst_17 [1] : vector<4x32xf32> to vector<4xf32>
    %22 = vector.shape_cast %21 : vector<4xf32> to vector<4x1xf32>
    %c0_18 = arith.constant 0 : index
    %c0_19 = arith.constant 0 : index
    %23 = vector.load %arg7[%c0_18, %c0_19] : memref<1x1xf32, #tpu.memory_space<vmem>>, vector<1x1xf32>
    %24 = vector.broadcast %23 : vector<1x1xf32> to vector<4x1xf32>
    %25 = arith.addf %22, %24 : vector<4x1xf32>
    %26 = vector.shape_cast %18 : vector<1x64xf32> to vector<1x1x64xf32>
    %27 = vector.broadcast %26 : vector<1x1x64xf32> to vector<4x8x64xf32>
    %28 = arith.mulf %5, %27 : vector<4x8x64xf32>
    %cst_20 = arith.constant dense<0.000000e+00> : vector<4x8xf32>
    %29 = vector.multi_reduction <add>, %28, %cst_20 [2] : vector<4x8x64xf32> to vector<4x8xf32>
    %30 = vector.broadcast %25 : vector<4x1xf32> to vector<4x8xf32>
    %31 = arith.addf %29, %30 : vector<4x8xf32>
    %cst_21 = arith.constant 0.000000e+00 : f32
    %32 = vector.broadcast %cst_21 : f32 to vector<4x8xf32>
    %33 = arith.maximumf %31, %32 : vector<4x8xf32>
    %cst_22 = arith.constant dense<0xFF800000> : vector<4xf32>
    %34 = vector.multi_reduction <maximumf>, %33, %cst_22 [1] : vector<4x8xf32> to vector<4xf32>
    %35 = vector.shape_cast %34 : vector<4xf32> to vector<4x1xf32>
    %36 = vector.broadcast %35 : vector<4x1xf32> to vector<4x8xf32>
    %37 = arith.subf %33, %36 : vector<4x8xf32>
    %38 = math.exp %37 : vector<4x8xf32>
    %cst_23 = arith.constant dense<0.000000e+00> : vector<4xf32>
    %39 = vector.multi_reduction <add>, %38, %cst_23 [1] : vector<4x8xf32> to vector<4xf32>
    %40 = vector.shape_cast %39 : vector<4xf32> to vector<4x1xf32>
    %41 = tpu.reciprocal %40 {approx = true} : vector<4x1xf32> -> vector<4x1xf32>
    %42 = vector.broadcast %41 : vector<4x1xf32> to vector<4x8xf32>
    %43 = arith.mulf %38, %42 : vector<4x8xf32>
    %44 = vector.shape_cast %43 : vector<4x8xf32> to vector<4x8x1xf32>
    %45 = vector.broadcast %44 : vector<4x8x1xf32> to vector<4x8x64xf32>
    %46 = arith.mulf %45, %5 : vector<4x8x64xf32>
    %cst_24 = arith.constant dense<0.000000e+00> : vector<4x64xf32>
    %47 = vector.multi_reduction <add>, %46, %cst_24 [1] : vector<4x8x64xf32> to vector<4x64xf32>
    %48 = tpu.concatenate %47, %16, %3 in 1 : vector<4x64xf32>, vector<4x16xf32>, vector<4x32xf32> -> vector<4x112xf32>
    %49 = arith.truncf %48 : vector<4x112xf32> to vector<4x112xbf16>
    %c0_25 = arith.constant 0 : index
    %c0_26 = arith.constant 0 : index
    %50 = vector.load %arg8[%c0_25, %c0_26] : memref<112x128xbf16, #tpu.memory_space<vmem>>, vector<112x128xbf16>
    %cst_27 = arith.constant dense<0.000000e+00> : vector<4x128xf32>
    %51 = tpu.matmul %49, %50, %cst_27 {dimension_numbers = #tpu.dot_dimension_numbers<[1], [0], [0], [1], [0, 0, 1, 1], [], []>} : vector<4x112xbf16>, vector<112x128xbf16>, vector<4x128xf32> -> vector<4x128xf32>
    %c0_28 = arith.constant 0 : index
    %c0_29 = arith.constant 0 : index
    %52 = vector.load %arg9[%c0_28, %c0_29] : memref<1x128xf32, #tpu.memory_space<vmem>>, vector<1x128xf32>
    %53 = vector.broadcast %52 : vector<1x128xf32> to vector<4x128xf32>
    %54 = arith.addf %51, %53 : vector<4x128xf32>
    %55 = vector.extract_strided_slice %54 {offsets = [0, 0], sizes = [4, 32], strides = [1, 1]} : vector<4x128xf32> to vector<4x32xf32>
    %56 = arith.negf %55 : vector<4x32xf32>
    %57 = math.exp %56 : vector<4x32xf32>
    %cst_30 = arith.constant 1.000000e+00 : f32
    %58 = vector.broadcast %cst_30 : f32 to vector<4x32xf32>
    %59 = arith.addf %58, %57 : vector<4x32xf32>
    %60 = arith.divf %58, %59 : vector<4x32xf32>
    %61 = vector.extract_strided_slice %54 {offsets = [0, 32], sizes = [4, 32], strides = [1, 1]} : vector<4x128xf32> to vector<4x32xf32>
    %62 = arith.negf %61 : vector<4x32xf32>
    %63 = math.exp %62 : vector<4x32xf32>
    %cst_31 = arith.constant 1.000000e+00 : f32
    %64 = vector.broadcast %cst_31 : f32 to vector<4x32xf32>
    %65 = arith.addf %64, %63 : vector<4x32xf32>
    %66 = arith.divf %64, %65 : vector<4x32xf32>
    %67 = vector.extract_strided_slice %54 {offsets = [0, 64], sizes = [4, 32], strides = [1, 1]} : vector<4x128xf32> to vector<4x32xf32>
    %68 = math.tanh %67 : vector<4x32xf32>
    %69 = vector.extract_strided_slice %54 {offsets = [0, 96], sizes = [4, 32], strides = [1, 1]} : vector<4x128xf32> to vector<4x32xf32>
    %70 = arith.negf %69 : vector<4x32xf32>
    %71 = math.exp %70 : vector<4x32xf32>
    %cst_32 = arith.constant 1.000000e+00 : f32
    %72 = vector.broadcast %cst_32 : f32 to vector<4x32xf32>
    %73 = arith.addf %72, %71 : vector<4x32xf32>
    %74 = arith.divf %72, %73 : vector<4x32xf32>
    %75 = arith.mulf %66, %4 : vector<4x32xf32>
    %76 = arith.mulf %60, %68 : vector<4x32xf32>
    %77 = arith.addf %75, %76 : vector<4x32xf32>
    %78 = math.tanh %77 : vector<4x32xf32>
    %79 = arith.mulf %74, %78 : vector<4x32xf32>
    %80 = arith.truncf %79 : vector<4x32xf32> to vector<4x32xbf16>
    %c0_33 = arith.constant 0 : index
    %c0_34 = arith.constant 0 : index
    %81 = vector.load %arg10[%c0_33, %c0_34] : memref<32x32xbf16, #tpu.memory_space<vmem>>, vector<32x32xbf16>
    %cst_35 = arith.constant dense<0.000000e+00> : vector<4x32xf32>
    %82 = tpu.matmul %80, %81, %cst_35 {dimension_numbers = #tpu.dot_dimension_numbers<[1], [0], [0], [1], [0, 0, 1, 1], [], []>} : vector<4x32xbf16>, vector<32x32xbf16>, vector<4x32xf32> -> vector<4x32xf32>
    %c0_36 = arith.constant 0 : index
    %c0_37 = arith.constant 0 : index
    %83 = vector.load %arg11[%c0_36, %c0_37] : memref<1x32xf32, #tpu.memory_space<vmem>>, vector<1x32xf32>
    %84 = vector.broadcast %83 : vector<1x32xf32> to vector<4x32xf32>
    %85 = arith.addf %82, %84 : vector<4x32xf32>
    %c0_38 = arith.constant 0 : index
    %c0_39 = arith.constant 0 : index
    %86 = vector.load %arg15[%c0_38, %c0_39] : memref<4x32xf32, #tpu.memory_space<vmem>>, vector<4x32xf32>
    tpu.vector_store %arg15[%c0_38, %c0_39], %79 {strides = array<i32>} : memref<4x32xf32, #tpu.memory_space<vmem>>, vector<4x32xf32>,
    %c0_40 = arith.constant 0 : index
    %c0_41 = arith.constant 0 : index
    %87 = vector.load %arg16[%c0_40, %c0_41] : memref<4x32xf32, #tpu.memory_space<vmem>>, vector<4x32xf32>
    tpu.vector_store %arg16[%c0_40, %c0_41], %77 {strides = array<i32>} : memref<4x32xf32, #tpu.memory_space<vmem>>, vector<4x32xf32>,
    %c0_42 = arith.constant 0 : index
    %c0_43 = arith.constant 0 : index
    %c0_44 = arith.constant 0 : index
    %88 = vector.load %arg12[%c0_42, %c0_43, %c0_44] : memref<1x4x32xf32, #tpu.memory_space<vmem>>, vector<1x4x32xf32>
    %89 = vector.shape_cast %88 : vector<1x4x32xf32> to vector<4x32xf32>
    %90 = vector.shape_cast %85 : vector<4x32xf32> to vector<1x4x32xf32>
    tpu.vector_store %arg12[%c0_42, %c0_43, %c0_44], %90 {strides = array<i32>} : memref<1x4x32xf32, #tpu.memory_space<vmem>>, vector<1x4x32xf32>,
    %c0_45 = arith.constant 0 : index
    %c0_46 = arith.constant 0 : index
    %91 = vector.load %arg13[%c0_45, %c0_46] : memref<4x32xf32, #tpu.memory_space<vmem>>, vector<4x32xf32>
    tpu.vector_store %arg13[%c0_45, %c0_46], %79 {strides = array<i32>} : memref<4x32xf32, #tpu.memory_space<vmem>>, vector<4x32xf32>,
    %c0_47 = arith.constant 0 : index
    %c0_48 = arith.constant 0 : index
    %92 = vector.load %arg14[%c0_47, %c0_48] : memref<4x32xf32, #tpu.memory_space<vmem>>, vector<4x32xf32>
    tpu.vector_store %arg14[%c0_47, %c0_48], %77 {strides = array<i32>} : memref<4x32xf32, #tpu.memory_space<vmem>>, vector<4x32xf32>,
    return
  }
  func.func @transform_0(%arg0: i32) -> (i32, i32, i32) {
    %c0_i32 = arith.constant 0 : i32
    %c0_i32_0 = arith.constant 0 : i32
    %c0_i32_1 = arith.constant 0 : i32
    return %arg0, %c0_i32, %c0_i32_0 : i32, i32, i32
  }
  func.func @transform_1(%arg0: i32) -> (i32, i32, i32) {
    %c0_i32 = arith.constant 0 : i32
    %c0_i32_0 = arith.constant 0 : i32
    %c0_i32_1 = arith.constant 0 : i32
    %c0_i32_2 = arith.constant 0 : i32
    return %c0_i32, %c0_i32_0, %c0_i32_1 : i32, i32, i32
  }
  func.func @transform_2(%arg0: i32) -> (i32, i32) {
    %c0_i32 = arith.constant 0 : i32
    %c0_i32_0 = arith.constant 0 : i32
    %c0_i32_1 = arith.constant 0 : i32
    return %c0_i32, %c0_i32_0 : i32, i32
  }
  func.func @transform_3(%arg0: i32) -> (i32, i32) {
    %c0_i32 = arith.constant 0 : i32
    %c0_i32_0 = arith.constant 0 : i32
    %c0_i32_1 = arith.constant 0 : i32
    return %c0_i32, %c0_i32_0 : i32, i32
  }
  func.func @transform_4(%arg0: i32) -> (i32, i32) {
    %c0_i32 = arith.constant 0 : i32
    %c0_i32_0 = arith.constant 0 : i32
    %c0_i32_1 = arith.constant 0 : i32
    return %c0_i32, %c0_i32_0 : i32, i32
  }
  func.func @transform_5(%arg0: i32) -> (i32, i32) {
    %c0_i32 = arith.constant 0 : i32
    %c0_i32_0 = arith.constant 0 : i32
    %c0_i32_1 = arith.constant 0 : i32
    return %c0_i32, %c0_i32_0 : i32, i32
  }
  func.func @transform_6(%arg0: i32) -> (i32, i32) {
    %c0_i32 = arith.constant 0 : i32
    %c0_i32_0 = arith.constant 0 : i32
    %c0_i32_1 = arith.constant 0 : i32
    return %c0_i32, %c0_i32_0 : i32, i32
  }
  func.func @transform_7(%arg0: i32) -> (i32, i32) {
    %c0_i32 = arith.constant 0 : i32
    %c0_i32_0 = arith.constant 0 : i32
    %c0_i32_1 = arith.constant 0 : i32
    return %c0_i32, %c0_i32_0 : i32, i32
  }
  func.func @transform_8(%arg0: i32) -> (i32, i32) {
    %c0_i32 = arith.constant 0 : i32
    %c0_i32_0 = arith.constant 0 : i32
    %c0_i32_1 = arith.constant 0 : i32
    return %c0_i32, %c0_i32_0 : i32, i32
  }
  func.func @transform_9(%arg0: i32) -> (i32, i32) {
    %c0_i32 = arith.constant 0 : i32
    %c0_i32_0 = arith.constant 0 : i32
    %c0_i32_1 = arith.constant 0 : i32
    return %c0_i32, %c0_i32_0 : i32, i32
  }
  func.func @transform_10(%arg0: i32) -> (i32, i32) {
    %c0_i32 = arith.constant 0 : i32
    %c0_i32_0 = arith.constant 0 : i32
    %c0_i32_1 = arith.constant 0 : i32
    return %c0_i32, %c0_i32_0 : i32, i32
  }
  func.func @transform_11(%arg0: i32) -> (i32, i32, i32) {
    %c0_i32 = arith.constant 0 : i32
    %c0_i32_0 = arith.constant 0 : i32
    %c0_i32_1 = arith.constant 0 : i32
    return %arg0, %c0_i32, %c0_i32_0 : i32, i32, i32
  }
  func.func @transform_12(%arg0: i32) -> (i32, i32) {
    %c0_i32 = arith.constant 0 : i32
    %c0_i32_0 = arith.constant 0 : i32
    %c0_i32_1 = arith.constant 0 : i32
    return %c0_i32, %c0_i32_0 : i32, i32
  }
  func.func @transform_13(%arg0: i32) -> (i32, i32) {
    %c0_i32 = arith.constant 0 : i32
    %c0_i32_0 = arith.constant 0 : i32
    %c0_i32_1 = arith.constant 0 : i32
    return %c0_i32, %c0_i32_0 : i32, i32
  }
}

</mosaic_0001>

<llo_original>
// kernel: decoder_decode.1
$region0: #{decoder_decode.1}
  #allocation0 [shape = 'u32[]', space=smem, size = 0x4, offset = 0x4, fixed_abs, tag = 'smem constant byte address 0x4 - core index']
  #allocation1 [shape = 'u32[144,128]{1,0:T(1,128)}', space=vmem, size = 0x12000, scoped, tag = 'internal scratch']
  #allocation2 [shape = 'f32[4,32]{1,0:T(4,128)}', space=vmem, size = 0x800, scoped, tag = 'scratch operand']
  #allocation3 [shape = 'f32[4,32]{1,0:T(4,128)}', space=vmem, size = 0x800, scoped, tag = 'scratch operand']
  #allocation4 [shape = 'f32[1,1]{1,0:T(1,128)S(1)}', space=vmem, size = 0x200, scoped, tag = 'scoped memory for decoder_decode.1']
  %s0 = inlined_call_operand.vmem [shape: s32[1,4,1], index: 0, kind: input, shape index: {}]
  %s1 = inlined_call_operand.vmem [shape: f32[4,8,64], index: 1, kind: input, shape index: {}]
  %s2 = inlined_call_operand.vmem [shape: f32[4,32], index: 2, kind: input, shape index: {}]
  %s3 = inlined_call_operand.vmem [shape: f32[4,32], index: 3, kind: input, shape index: {}]
  %s4 = inlined_call_operand.vmem [shape: bf16[32,16], index: 4, kind: input, shape index: {}]
  %s5 = inlined_call_operand.vmem [shape: f32[1,96], index: 5, kind: input, shape index: {}]
  %s6 = inlined_call_operand.<no memory space> [shape: f32[1,1], index: 6, kind: input, shape index: {}]
  %s7 = inlined_call_operand.vmem [shape: bf16[112,128], index: 7, kind: input, shape index: {}]
  %s8 = inlined_call_operand.vmem [shape: f32[1,128], index: 8, kind: input, shape index: {}]
  %s9 = inlined_call_operand.vmem [shape: bf16[32,32], index: 9, kind: input, shape index: {}]
  %s10 = inlined_call_operand.vmem [shape: f32[1,32], index: 10, kind: input, shape index: {}]
  %s11 = inlined_call_operand.hbm [shape: f32[1,4,32], index: 11, kind: output, shape index: {0}]
  %s12 = inlined_call_operand.hbm [shape: f32[4,32], index: 12, kind: output, shape index: {1}]
  %s13 = inlined_call_operand.hbm [shape: f32[4,32], index: 13, kind: output, shape index: {2}]
  %14 = xla_tuple %s11, %s12, %s13
  %s15 = sld [smem:[#allocation0]]
  $region74: #{decoder_decode.1} parent=0
    _
  %s17 = ssub.s32 1, %s15
  %s18 = scalar_select 0, %s17, %s15
  %v19 = vstv %s6
  %20 = vst [vmem:[#allocation4] sm:$0x1] %v19
  $region1: #{decoder_decode.1} parent=0
    #allocation5 [shape = 'u8[2048]{0}', space=vmem, size = 0x800, scoped, tag = 'output window, operand 0, single buffered']
    #allocation6 [shape = 's32[1]{0}', space=sflag, size = 0x4, scoped, tag = 'scoped memory for decoder_decode.1']
    #allocation7 [shape = 'u8[2048]{0}', space=vmem, size = 0x800, scoped, tag = 'output window, operand 1, single buffered']
    #allocation8 [shape = 's32[1]{0}', space=sflag, size = 0x4, scoped, tag = 'scoped memory for decoder_decode.1']
    #allocation9 [shape = 'u8[2048]{0}', space=vmem, size = 0x800, scoped, tag = 'output window, operand 2, single buffered']
    %21 = vsyncpa [#allocation6], 0
    %22 = vsyncpa [#allocation8], 0
    // Predicated region
    $region2: #{decoder_decode.1} parent=1 // pred_check
      _
    $region3: #{decoder_decode.1} parent=1 // pred_check_branch
      %24 = sbr.rel (0) target = $region5
    $region4: #{decoder_decode.1} parent=1 // pred_region
      _
    $region5: #{decoder_decode.1} parent=1 // pred_fallthru
      _
    // Predicated region
    $region6: #{decoder_decode.1} parent=1 // pred_check
      _
    $region7: #{decoder_decode.1} parent=1 // pred_check_branch
      %26 = sbr.rel (0) target = $region9
    $region8: #{decoder_decode.1} parent=1 // pred_region
      _
    $region9: #{decoder_decode.1} parent=1 // pred_fallthru
      _
    // Predicated region
    $region10: #{decoder_decode.1} parent=1 // pred_check
      _
    $region11: #{decoder_decode.1} parent=1 // pred_check_branch
      %28 = sbr.rel (0) target = $region13
    $region12: #{decoder_decode.1} parent=1 // pred_region
      _
    $region13: #{decoder_decode.1} parent=1 // pred_fallthru
      _
    // Predicated region
    $region14: #{decoder_decode.1} parent=1 // pred_check
      _
    $region15: #{decoder_decode.1} parent=1 // pred_check_branch
      %30 = sbr.rel (0) target = $region17
    $region16: #{decoder_decode.1} parent=1 // pred_region
      _
    $region17: #{decoder_decode.1} parent=1 // pred_fallthru
      _
    // Predicated region
    $region18: #{decoder_decode.1} parent=1 // pred_check
      _
    $region19: #{decoder_decode.1} parent=1 // pred_check_branch
      %32 = sbr.rel (0) target = $region21
    $region20: #{decoder_decode.1} parent=1 // pred_region
      _
    $region21: #{decoder_decode.1} parent=1 // pred_fallthru
      _
    // Predicated region
    $region22: #{decoder_decode.1} parent=1 // pred_check
      _
    $region23: #{decoder_decode.1} parent=1 // pred_check_branch
      %34 = sbr.rel (0) target = $region25
    $region24: #{decoder_decode.1} parent=1 // pred_region
      _
    $region25: #{decoder_decode.1} parent=1 // pred_fallthru
      _
    // Predicated region
    $region26: #{decoder_decode.1} parent=1 // pred_check
      _
    $region27: #{decoder_decode.1} parent=1 // pred_check_branch
      %36 = sbr.rel (0) target = $region29
    $region28: #{decoder_decode.1} parent=1 // pred_region
      _
    $region29: #{decoder_decode.1} parent=1 // pred_fallthru
      _
    // Predicated region
    $region30: #{decoder_decode.1} parent=1 // pred_check
      _
    $region31: #{decoder_decode.1} parent=1 // pred_check_branch
      %38 = sbr.rel (0) target = $region33
    $region32: #{decoder_decode.1} parent=1 // pred_region
      _
    $region33: #{decoder_decode.1} parent=1 // pred_fallthru
      _
    // Predicated region
    $region34: #{decoder_decode.1} parent=1 // pred_check
      _
    $region35: #{decoder_decode.1} parent=1 // pred_check_branch
      %40 = sbr.rel (0) target = $region37
    $region36: #{decoder_decode.1} parent=1 // pred_region
      _
    $region37: #{decoder_decode.1} parent=1 // pred_fallthru
      _
    // Predicated region
    $region38: #{decoder_decode.1} parent=1 // pred_check
      _
    $region39: #{decoder_decode.1} parent=1 // pred_check_branch
      %42 = sbr.rel (0) target = $region41
    $region40: #{decoder_decode.1} parent=1 // pred_region
      _
    $region41: #{decoder_decode.1} parent=1 // pred_fallthru
      _
    // Predicated region
    $region42: #{decoder_decode.1} parent=1 // pred_check
      _
    $region43: #{decoder_decode.1} parent=1 // pred_check_branch
      %44 = sbr.rel (0) target = $region45
    $region44: #{decoder_decode.1} parent=1 // pred_region
      _
    $region45: #{decoder_decode.1} parent=1 // pred_fallthru
      _
    %p46 = scmp.eq.s32.totalorder 0, 0
    // Predicated region
    $region46: #{decoder_decode.1} parent=1 // pred_check
      %p47 = pneg %p46
    $region47: #{decoder_decode.1} parent=1 // pred_check_branch
      %49 = sbr.rel (%p47) target = $region49
    $region48: #{decoder_decode.1} parent=1 // pred_region
      %v50 = vld [vmem:[%s2] sm:$0xf]
      %vm51 = vcmask 257024
      %52 = vst.msk [vmem:[#allocation2] sm:$0xf] %vm51, %v50
      %v53 = vld [vmem:[%s3] sm:$0xf]
      %54 = vst.msk [vmem:[#allocation3] sm:$0xf] %vm51, %v53
    $region49: #{decoder_decode.1} parent=1 // pred_fallthru
      _
    %v55 = vld [vmem:[#allocation2] sm:$0xf]
    %v56 = vld [vmem:[#allocation3] sm:$0xf]
    %v57 = vld [vmem:[%s1] sm:$0xff]
    %v58 = vld [vmem:[%s1 + $0x8] sm:$0xff]
    %v59 = vld [vmem:[%s1 + $0x10] sm:$0xff]
    %v60 = vld [vmem:[%s1 + $0x18] sm:$0xff]
    %v61 = vld [vmem:[%s0] sm:$0xf]
    %v62 = vlaneseq
    %v63 = vand.u32 %v62, 127
    %64 = vset.pattern.permute.xlu0 0
    %65 = vperm.xlu0 %64, %v61
    %v66 = vpop.permute.xlu0 %65
    %vm67 = vcmp.eq.s32.totalorder %v66, %v63
    %v68 = vsel %vm67, 1.0, 0.0
    %v69 = vpack.c.bf16 %v68, %v68
    %v70 = vld [vmem:[%s4] sm:$0xf]
    %v71 = vld [vmem:[%s4 + $0x4] sm:$0xf]
    %v72 = vld [vmem:[%s4 + $0x8] sm:$0xf]
    %v73 = vld [vmem:[%s4 + $0xc] sm:$0xf]
    %v78 = vunpack.c.l.b16 %v70
    %v79 = vunpack.c.l.b16 %v71
    %v80 = vunpack.c.l.b16 %v72
    %v81 = vunpack.c.l.b16 %v73
    %v82 = vpack.c.b16 %v79, %v78
    %v83 = vpack.c.b16 %v81, %v80
    %vm86 = vcmask 261120
    %v88 = vsel %vm86, %v69, 0
    %90 = vmatprep.subr.bf16.mxu0 0
    %91 = vmatpush1.bf16.msra.mxu0 0
    %92 = vmatprep.subr.bf16.mxu0 0
    %93 = vmatpush1.bf16.msra.mxu0 0
    %94 = vmatprep.subr.bf16.mxu0 0
    %95 = vmatpush1.bf16.msra.mxu0 0
    %96 = vmatprep.subr.bf16.mxu0 0
    %97 = vmatpush1.bf16.msra.mxu0 0
    %98 = vmatprep.subr.bf16.mxu0 0
    %99 = vmatpush1.bf16.msra.mxu0 0
    %100 = vmatprep.subr.bf16.mxu0 0
    %101 = vmatpush1.bf16.msra.mxu0 0
    %102 = vmatprep.subr.bf16.mxu0 0
    %103 = vmatpush1.bf16.msra.mxu0 %v83
    %104 = vmatprep.subr.bf16.mxu0 0
    %105 = vmatpush1.bf16.msra.mxu0 %v82
    %106 = vmatprep.subr.bf16.mxu0 0
    %107 = vmatpush2.bf16.msra.mxu0 0
    %108 = vmatprep.subr.bf16.mxu0 0
    %109 = vmatpush2.bf16.msra.mxu0 0
    %110 = vmatprep.subr.bf16.mxu0 0
    %111 = vmatpush2.bf16.msra.mxu0 0
    %112 = vmatprep.subr.bf16.mxu0 0
    %113 = vmatpush2.bf16.msra.mxu0 0
    %114 = vmatprep.subr.bf16.mxu0 0
    %115 = vmatpush2.bf16.msra.mxu0 0
    %116 = vmatprep.subr.bf16.mxu0 0
    %117 = vmatpush2.bf16.msra.mxu0 0
    %118 = vmatprep.subr.bf16.mxu0 0
    %119 = vmatpush2.bf16.msra.mxu0 0
    %120 = vmatprep.subr.bf16.mxu0 0
    %121 = vmatpush2.bf16.msra.mxu0 0
    %122 = vmatprep.mubr.bf16.mxu0 0
    %123 = vmatmul.mubr.bf16.gmra.mxu0 %v88
    %v124 = vpop.f32.mrf.mxu0
    %v125 = vadd.f32 0.0, %v124
    %v126 = vpop.f32.mrf.mxu0
    %v127 = vpop.f32.mrf.mxu0
    %v128 = vpop.f32.mrf.mxu0
    %129 = vdwg.mxu0
    %v130 = vld [vmem:[%s5] sm:$0x1]
    %v132 = vlaneseq
    %v133 = vshrl.u32 %v132, 7
    %v134 = vsub.s32 0, %v133
    %v135 = vrot.slane %v130, %v134
    %v137 = vmul.f32 %v55, %v135
    %vm138 = vcmask 257024
    %v139 = vsel %vm138, %v137, 0.0
    %140 = vadd.xlane.f32.xlu0 %v139
    %v141 = vpop.xlane.xlu0 %140
    %v142 = vld [vmem:[#allocation4] sm:$0x1]
    %v144 = vlaneseq
    %v145 = vshrl.u32 %v144, 7
    %v146 = vsub.s32 0, %v145
    %v147 = vrot.slane %v142, %v146
    %v149 = vadd.f32 %v141, %v147
    %150 = vrot.lane.b32.xlu0 %v135, 96
    %v151 = vpop.permute.xlu0 %150
    %v153 = vmul.f32 %v57, %v151
    %v154 = vmul.f32 %v58, %v151
    %v155 = vmul.f32 %v59, %v151
    %v156 = vmul.f32 %v60, %v151
    %vm157 = vcmask 523264
    %v158 = vsel %vm157, %v153, 0.0
    %159 = vadd.xlane.f32.xlu0 %v158
    %v160 = vpop.xlane.xlu0 %159
    %v161 = vsel %vm157, %v154, 0.0
    %162 = vadd.xlane.f32.xlu0 %v161
    %v163 = vpop.xlane.xlu0 %162
    %v164 = vsel %vm157, %v155, 0.0
    %165 = vadd.xlane.f32.xlu0 %v164
    %v166 = vpop.xlane.xlu0 %165
    %v167 = vsel %vm157, %v156, 0.0
    %168 = vadd.xlane.f32.xlu0 %v167
    %v169 = vpop.xlane.xlu0 %168
    %171 = vset.pattern.permute.xlu0 0
    %172 = vperm.xlu0 %171, %v149
    %v173 = vpop.permute.xlu0 %172
    %v174 = vlaneseq
    %v175 = vshrl.u32 %v174, 7
    %v176 = vsub.s32 0, %v175
    %v177 = vrot.slane %v173, %v176
    %v178 = vlaneseq
    %v179 = vshrl.u32 %v178, 7
    %v180 = vsub.s32 1, %v179
    %v181 = vrot.slane %v173, %v180
    %v182 = vlaneseq
    %v183 = vshrl.u32 %v182, 7
    %v184 = vsub.s32 2, %v183
    %v185 = vrot.slane %v173, %v184
    %v186 = vlaneseq
    %v187 = vshrl.u32 %v186, 7
    %v188 = vsub.s32 3, %v187
    %v189 = vrot.slane %v173, %v188
    %v194 = vadd.f32 %v160, %v177
    %v195 = vadd.f32 %v163, %v181
    %v196 = vadd.f32 %v166, %v185
    %v197 = vadd.f32 %v169, %v189
    %v198 = vmax.f32 %v194, 0.0
    %v199 = vmax.f32 %v195, 0.0
    %v200 = vmax.f32 %v196, 0.0
    %v201 = vmax.f32 %v197, 0.0
    %206 = vset.pattern.permute.xlu0 0
    %207 = vperm.xlu0 %206, %v198
    %v208 = vpop.permute.xlu0 %207
    %209 = vset.pattern.permute.xlu0 0
    %210 = vperm.xlu0 %209, %v199
    %v211 = vpop.permute.xlu0 %210
    %212 = vset.pattern.permute.xlu0 0
    %213 = vperm.xlu0 %212, %v200
    %v214 = vpop.permute.xlu0 %213
    %215 = vset.pattern.permute.xlu0 0
    %216 = vperm.xlu0 %215, %v201
    %v217 = vpop.permute.xlu0 %216
    %v218 = vlaneseq
    %v219 = vshrl.u32 %v218, 7
    %v220 = vsub.s32 %v63, %v219
    %v221 = vrot.slane %v208, %v220
    %v222 = vlaneseq
    %v223 = vshrl.u32 %v222, 7
    %v224 = vsub.s32 %v63, %v223
    %v225 = vrot.slane %v211, %v224
    %v226 = vlaneseq
    %v227 = vshrl.u32 %v226, 7
    %v228 = vsub.s32 %v63, %v227
    %v229 = vrot.slane %v214, %v228
    %v230 = vlaneseq
    %v231 = vshrl.u32 %v230, 7
    %v232 = vsub.s32 %v63, %v231
    %v233 = vrot.slane %v217, %v232
    %vm234 = vcmask 1041409
    %v235 = vsel %vm234, %v225, %v221
    %vm236 = vcmask 1042434
    %v237 = vsel %vm236, %v229, %v235
    %vm238 = vcmask 1043459
    %v239 = vsel %vm238, %v233, %v237
    %vm241 = vcmask 60416
    %v242 = vsel %vm241, %v239, -inf
    %243 = vmax.xlane.f32.xlu0 %v242
    %v244 = vpop.xlane.xlu0 %243
    %v246 = vlaneseq
    %v247 = vshrl.u32 %v246, 7
    %v248 = vsub.s32 0, %v247
    %v249 = vrot.slane %v244, %v248
    %v250 = vlaneseq
    %v251 = vshrl.u32 %v250, 7
    %v252 = vsub.s32 1, %v251
    %v253 = vrot.slane %v244, %v252
    %v254 = vlaneseq
    %v255 = vshrl.u32 %v254, 7
    %v256 = vsub.s32 2, %v255
    %v257 = vrot.slane %v244, %v256
    %v258 = vlaneseq
    %v259 = vshrl.u32 %v258, 7
    %v260 = vsub.s32 3, %v259
    %v261 = vrot.slane %v244, %v260
    %v266 = vsub.f32 %v198, %v249
    %v267 = vsub.f32 %v199, %v253
    %v268 = vsub.f32 %v200, %v257
    %v269 = vsub.f32 %v201, %v261
    %v270 = vmul.f32 %v266, 1.442695
    %v271 = vpow.pop %v270
    %v272 = vmul.f32 %v267, 1.442695
    %v273 = vpow.pop %v272
    %v274 = vmul.f32 %v268, 1.442695
    %v275 = vpow.pop %v274
    %v276 = vmul.f32 %v269, 1.442695
    %v277 = vpow.pop %v276
    %282 = vset.pattern.permute.xlu0 0
    %283 = vperm.xlu0 %282, %v271
    %v284 = vpop.permute.xlu0 %283
    %285 = vset.pattern.permute.xlu0 0
    %286 = vperm.xlu0 %285, %v273
    %v287 = vpop.permute.xlu0 %286
    %288 = vset.pattern.permute.xlu0 0
    %289 = vperm.xlu0 %288, %v275
    %v290 = vpop.permute.xlu0 %289
    %291 = vset.pattern.permute.xlu0 0
    %292 = vperm.xlu0 %291, %v277
    %v293 = vpop.permute.xlu0 %292
    %v294 = vlaneseq
    %v295 = vshrl.u32 %v294, 7
    %v296 = vsub.s32 %v63, %v295
    %v297 = vrot.slane %v284, %v296
    %v298 = vlaneseq
    %v299 = vshrl.u32 %v298, 7
    %v300 = vsub.s32 %v63, %v299
    %v301 = vrot.slane %v287, %v300
    %v302 = vlaneseq
    %v303 = vshrl.u32 %v302, 7
    %v304 = vsub.s32 %v63, %v303
    %v305 = vrot.slane %v290, %v304
    %v306 = vlaneseq
    %v307 = vshrl.u32 %v306, 7
    %v308 = vsub.s32 %v63, %v307
    %v309 = vrot.slane %v293, %v308
    %v310 = vsel %vm234, %v301, %v297
    %v311 = vsel %vm236, %v305, %v310
    %v312 = vsel %vm238, %v309, %v311
    %v314 = vsel %vm241, %v312, 0.0
    %315 = vadd.xlane.f32.xlu0 %v314
    %v316 = vpop.xlane.xlu0 %315
    %v317 = vrcp.pop %v316
    %v319 = vlaneseq
    %v320 = vshrl.u32 %v319, 7
    %v321 = vsub.s32 0, %v320
    %v322 = vrot.slane %v317, %v321
    %v323 = vlaneseq
    %v324 = vshrl.u32 %v323, 7
    %v325 = vsub.s32 1, %v324
    %v326 = vrot.slane %v317, %v325
    %v327 = vlaneseq
    %v328 = vshrl.u32 %v327, 7
    %v329 = vsub.s32 2, %v328
    %v330 = vrot.slane %v317, %v329
    %v331 = vlaneseq
    %v332 = vshrl.u32 %v331, 7
    %v333 = vsub.s32 3, %v332
    %v334 = vrot.slane %v317, %v333
    %v339 = vmul.f32 %v271, %v322
    %v340 = vmul.f32 %v273, %v326
    %v341 = vmul.f32 %v275, %v330
    %v342 = vmul.f32 %v277, %v334
    %344 = vset.pattern.permute.xlu0 0
    %345 = vperm.xlu0 %344, %v339
    %v346 = vpop.permute.xlu0 %345
    %349 = vset.pattern.permute.xlu0 0
    %350 = vperm.xlu0 %349, %v340
    %v351 = vpop.permute.xlu0 %350
    %354 = vset.pattern.permute.xlu0 0
    %355 = vperm.xlu0 %354, %v341
    %v356 = vpop.permute.xlu0 %355
    %359 = vset.pattern.permute.xlu0 0
    %360 = vperm.xlu0 %359, %v342
    %v361 = vpop.permute.xlu0 %360
    %v363 = vmul.f32 %v346, %v57
    %v364 = vmul.f32 %v351, %v58
    %v365 = vmul.f32 %v356, %v59
    %v366 = vmul.f32 %v361, %v60
    %v367 = vsel %vm157, %v363, 0.0
    %v368 = vrot.slane %v367, 4
    %v369 = vadd.f32 %v367, %v368
    %v370 = vrot.slane %v369, 2
    %v371 = vadd.f32 %v369, %v370
    %v372 = vrot.slane %v371, 1
    %v373 = vadd.f32 %v371, %v372
    %v374 = vsel %vm157, %v364, 0.0
    %v375 = vrot.slane %v374, 4
    %v376 = vadd.f32 %v374, %v375
    %v377 = vrot.slane %v376, 2
    %v378 = vadd.f32 %v376, %v377
    %v379 = vrot.slane %v378, 1
    %v380 = vadd.f32 %v378, %v379
    %v381 = vsel %vm157, %v365, 0.0
    %v382 = vrot.slane %v381, 4
    %v383 = vadd.f32 %v381, %v382
    %v384 = vrot.slane %v383, 2
    %v385 = vadd.f32 %v383, %v384
    %v386 = vrot.slane %v385, 1
    %v387 = vadd.f32 %v385, %v386
    %v388 = vsel %vm157, %v366, 0.0
    %v389 = vrot.slane %v388, 4
    %v390 = vadd.f32 %v388, %v389
    %v391 = vrot.slane %v390, 2
    %v392 = vadd.f32 %v390, %v391
    %v393 = vrot.slane %v392, 1
    %v394 = vadd.f32 %v392, %v393
    %v399 = vsel %vm234, %v380, %v373
    %v400 = vsel %vm236, %v387, %v399
    %v401 = vsel %vm238, %v394, %v400
    %404 = vrot.lane.b32.xlu0 %v125, 64
    %v405 = vpop.permute.xlu0 %404
    %408 = vrot.lane.b32.xlu0 %v55, 80
    %v409 = vpop.permute.xlu0 %408
    %v411 = vsel %vm157, %v401, %v405
    %vm412 = vcmask 654336
    %v413 = vsel %vm412, %v411, %v409
    %v414 = vpack.c.bf16 %v413, %v413
    %v415 = vld [vmem:[%s7] sm:$0xf]
    %v416 = vld [vmem:[%s7 + $0x4] sm:$0xf]
    %v417 = vld [vmem:[%s7 + $0x8] sm:$0xf]
    %v418 = vld [vmem:[%s7 + $0xc] sm:$0xf]
    %v419 = vld [vmem:[%s7 + $0x10] sm:$0xf]
    %v420 = vld [vmem:[%s7 + $0x14] sm:$0xf]
    %v421 = vld [vmem:[%s7 + $0x18] sm:$0xf]
    %v422 = vld [vmem:[%s7 + $0x1c] sm:$0xf]
    %v423 = vld [vmem:[%s7 + $0x20] sm:$0xf]
    %v424 = vld [vmem:[%s7 + $0x24] sm:$0xf]
    %v425 = vld [vmem:[%s7 + $0x28] sm:$0xf]
    %v426 = vld [vmem:[%s7 + $0x2c] sm:$0xf]
    %v427 = vld [vmem:[%s7 + $0x30] sm:$0xf]
    %v428 = vld [vmem:[%s7 + $0x34] sm:$0xf]
    %v429 = vld [vmem:[%s8] sm:$0x1]
    %v431 = vlaneseq
    %v432 = vshrl.u32 %v431, 7
    %v433 = vsub.s32 0, %v432
    %v434 = vrot.slane %v429, %v433
    %v450 = vunpack.c.l.b16 %v415
    %v451 = vunpack.c.l.b16 %v416
    %v452 = vunpack.c.l.b16 %v417
    %v453 = vunpack.c.l.b16 %v418
    %v454 = vunpack.c.l.b16 %v419
    %v455 = vunpack.c.l.b16 %v420
    %v456 = vunpack.c.l.b16 %v421
    %v457 = vunpack.c.l.b16 %v422
    %v458 = vunpack.c.l.b16 %v423
    %v459 = vunpack.c.l.b16 %v424
    %v460 = vunpack.c.l.b16 %v425
    %v461 = vunpack.c.l.b16 %v426
    %v462 = vunpack.c.l.b16 %v427
    %v463 = vunpack.c.l.b16 %v428
    %v464 = vpack.c.b16 %v451, %v450
    %v465 = vpack.c.b16 %v453, %v452
    %v466 = vpack.c.b16 %v455, %v454
    %v467 = vpack.c.b16 %v457, %v456
    %v468 = vpack.c.b16 %v459, %v458
    %v469 = vpack.c.b16 %v461, %v460
    %v470 = vpack.c.b16 %v463, %v462
    %vm478 = vcmask 916480
    %v480 = vsel %vm478, %v414, 0
    %482 = vmatprep.subr.bf16.mxu0 0
    %483 = vmatpush1.bf16.msra.mxu0 0
    %484 = vmatprep.subr.bf16.mxu0 0
    %485 = vmatpush1.bf16.msra.mxu0 %v470
    %486 = vmatprep.subr.bf16.mxu0 0
    %487 = vmatpush1.bf16.msra.mxu0 %v469
    %488 = vmatprep.subr.bf16.mxu0 0
    %489 = vmatpush1.bf16.msra.mxu0 %v468
    %490 = vmatprep.subr.bf16.mxu0 0
    %491 = vmatpush1.bf16.msra.mxu0 %v467
    %492 = vmatprep.subr.bf16.mxu0 0
    %493 = vmatpush1.bf16.msra.mxu0 %v466
    %494 = vmatprep.subr.bf16.mxu0 0
    %495 = vmatpush1.bf16.msra.mxu0 %v465
    %496 = vmatprep.subr.bf16.mxu0 0
    %497 = vmatpush1.bf16.msra.mxu0 %v464
    %498 = vmatprep.subr.bf16.mxu0 0
    %499 = vmatpush2.bf16.msra.mxu0 0
    %500 = vmatprep.subr.bf16.mxu0 0
    %501 = vmatpush2.bf16.msra.mxu0 0
    %502 = vmatprep.subr.bf16.mxu0 0
    %503 = vmatpush2.bf16.msra.mxu0 0
    %504 = vmatprep.subr.bf16.mxu0 0
    %505 = vmatpush2.bf16.msra.mxu0 0
    %506 = vmatprep.subr.bf16.mxu0 0
    %507 = vmatpush2.bf16.msra.mxu0 0
    %508 = vmatprep.subr.bf16.mxu0 0
    %509 = vmatpush2.bf16.msra.mxu0 0
    %510 = vmatprep.subr.bf16.mxu0 0
    %511 = vmatpush2.bf16.msra.mxu0 0
    %512 = vmatprep.subr.bf16.mxu0 0
    %513 = vmatpush2.bf16.msra.mxu0 0
    %514 = vmatprep.mubr.bf16.mxu0 0
    %515 = vmatmul.mubr.bf16.gmra.mxu0 %v480
    %v516 = vpop.f32.mrf.mxu0
    %v517 = vadd.f32 %v434, %v516
    %v518 = vpop.f32.mrf.mxu0
    %v519 = vpop.f32.mrf.mxu0
    %v520 = vpop.f32.mrf.mxu0
    %521 = vdwg.mxu0
    %v522 = vxor.u32 %v517, 2147483648
    %v523 = vmul.f32 %v522, 1.442695
    %v524 = vpow.pop %v523
    %v525 = vadd.f32 %v524, 1.0
    %v526 = vrcp.pop %v525
    %v527 = vmul.f32 1.0, %v526
    %v528 = vtanh.pop %v517
    %530 = vrot.lane.b32.xlu0 %v56, 32
    %v531 = vpop.permute.xlu0 %530
    %v533 = vmul.f32 %v527, %v531
    %535 = vrot.lane.b32.xlu0 %v528, 64
    %v536 = vpop.permute.xlu0 %535
    %v538 = vmul.f32 %v527, %v536
    %540 = vrot.lane.b32.xlu0 %v538, 32
    %v541 = vpop.permute.xlu0 %540
    %v543 = vadd.f32 %v533, %v541
    %v544 = vtanh.pop %v543
    %546 = vrot.lane.b32.xlu0 %v544, 64
    %v547 = vpop.permute.xlu0 %546
    %v549 = vmul.f32 %v527, %v547
    %v550 = vpack.c.bf16 %v549, %v549
    %v551 = vld [vmem:[%s9] sm:$0xf]
    %v552 = vld [vmem:[%s9 + $0x4] sm:$0xf]
    %v553 = vld [vmem:[%s9 + $0x8] sm:$0xf]
    %v554 = vld [vmem:[%s9 + $0xc] sm:$0xf]
    %v555 = vld [vmem:[%s10] sm:$0x1]
    %v557 = vlaneseq
    %v558 = vshrl.u32 %v557, 7
    %v559 = vsub.s32 0, %v558
    %v560 = vrot.slane %v555, %v559
    %563 = vrot.lane.b32.xlu0 %v550, 32
    %v564 = vpop.permute.xlu0 %563
    %v569 = vunpack.c.l.b16 %v551
    %v570 = vunpack.c.l.b16 %v552
    %v571 = vunpack.c.l.b16 %v553
    %v572 = vunpack.c.l.b16 %v554
    %v573 = vpack.c.b16 %v570, %v569
    %v574 = vpack.c.b16 %v572, %v571
    %v578 = vsel %vm86, %v564, 0
    %580 = vmatprep.subr.bf16.mxu0 0
    %581 = vmatpush1.bf16.msra.mxu0 0
    %582 = vmatprep.subr.bf16.mxu0 0
    %583 = vmatpush1.bf16.msra.mxu0 0
    %584 = vmatprep.subr.bf16.mxu0 0
    %585 = vmatpush1.bf16.msra.mxu0 0
    %586 = vmatprep.subr.bf16.mxu0 0
    %587 = vmatpush1.bf16.msra.mxu0 0
    %588 = vmatprep.subr.bf16.mxu0 0
    %589 = vmatpush1.bf16.msra.mxu0 0
    %590 = vmatprep.subr.bf16.mxu0 0
    %591 = vmatpush1.bf16.msra.mxu0 0
    %592 = vmatprep.subr.bf16.mxu0 0
    %593 = vmatpush1.bf16.msra.mxu0 %v574
    %594 = vmatprep.subr.bf16.mxu0 0
    %595 = vmatpush1.bf16.msra.mxu0 %v573
    %596 = vmatprep.subr.bf16.mxu0 0
    %597 = vmatpush2.bf16.msra.mxu0 0
    %598 = vmatprep.subr.bf16.mxu0 0
    %599 = vmatpush2.bf16.msra.mxu0 0
    %600 = vmatprep.subr.bf16.mxu0 0
    %601 = vmatpush2.bf16.msra.mxu0 0
    %602 = vmatprep.subr.bf16.mxu0 0
    %603 = vmatpush2.bf16.msra.mxu0 0
    %604 = vmatprep.subr.bf16.mxu0 0
    %605 = vmatpush2.bf16.msra.mxu0 0
    %606 = vmatprep.subr.bf16.mxu0 0
    %607 = vmatpush2.bf16.msra.mxu0 0
    %608 = vmatprep.subr.bf16.mxu0 0
    %609 = vmatpush2.bf16.msra.mxu0 0
    %610 = vmatprep.subr.bf16.mxu0 0
    %611 = vmatpush2.bf16.msra.mxu0 0
    %612 = vmatprep.mubr.bf16.mxu0 0
    %613 = vmatmul.mubr.bf16.gmra.mxu0 %v578
    %v614 = vpop.f32.mrf.mxu0
    %v615 = vadd.f32 %v560, %v614
    %v616 = vpop.f32.mrf.mxu0
    %v617 = vpop.f32.mrf.mxu0
    %v618 = vpop.f32.mrf.mxu0
    %619 = vdwg.mxu0
    %621 = vrot.lane.b32.xlu0 %v549, 32
    %v622 = vpop.permute.xlu0 %621
    %624 = vst.msk [vmem:[#allocation2] sm:$0xf] %vm138, %v622
    %626 = vrot.lane.b32.xlu0 %v543, 96
    %v627 = vpop.permute.xlu0 %626
    %629 = vst.msk [vmem:[#allocation3] sm:$0xf] %vm138, %v627
    %630 = vst.msk [vmem:[#allocation5] sm:$0xf] %vm138, %v615
    %631 = vst.msk [vmem:[#allocation7] sm:$0xf] %vm138, %v622
    %632 = vst.msk [vmem:[#allocation9] sm:$0xf] %vm138, %v627
    // Predicated region
    $region50: #{decoder_decode.1} parent=1 // pred_check
      _
    $region51: #{decoder_decode.1} parent=1 // pred_check_branch
      %634 = sbr.rel (0) target = $region53
    $region52: #{decoder_decode.1} parent=1 // pred_region
      %s636 = ssub.s32 64, 64
      %637 = vsyncadd [#allocation6], %s636
      %s639 = sshll.u32 [#allocation5], 4
      %s640 = int_to_ptr.vmem [resolvable:$true] %s639
      %642 = dma.vmem_to_hbm [thread:$0]  %s640, 64, %s11, [#allocation6]
    $region53: #{decoder_decode.1} parent=1 // pred_fallthru
      _
    // Predicated region
    $region54: #{decoder_decode.1} parent=1 // pred_check
      _
    $region55: #{decoder_decode.1} parent=1 // pred_check_branch
      %644 = sbr.rel (0) target = $region57
    $region56: #{decoder_decode.1} parent=1 // pred_region
      %s646 = ssub.s32 64, 64
      %647 = vsyncadd [#allocation8], %s646
      %s649 = sshll.u32 [#allocation7], 4
      %s650 = int_to_ptr.vmem [resolvable:$true] %s649
      %652 = dma.vmem_to_hbm [thread:$0]  %s650, 64, %s12, [#allocation8]
    $region57: #{decoder_decode.1} parent=1 // pred_fallthru
      _
    // Predicated region
    $region58: #{decoder_decode.1} parent=1 // pred_check
      _
    $region59: #{decoder_decode.1} parent=1 // pred_check_branch
      %654 = sbr.rel (0) target = $region61
    $region60: #{decoder_decode.1} parent=1 // pred_region
      %s656 = ssub.s32 64, 64
      %657 = vsyncadd [#allocation8], %s656
      %s659 = sshll.u32 [#allocation9], 4
      %s660 = int_to_ptr.vmem [resolvable:$true] %s659
      %662 = dma.vmem_to_hbm [thread:$0]  %s660, 64, %s13, [#allocation8]
    $region61: #{decoder_decode.1} parent=1 // pred_fallthru
      _
    // Predicated region
    $region62: #{decoder_decode.1} parent=1 // pred_check
      _
    $region63: #{decoder_decode.1} parent=1 // pred_check_branch
      %664 = sbr.rel (0) target = $region65
    $region64: #{decoder_decode.1} parent=1 // pred_region
      %665 = dma.done [#allocation6], 64
    $region65: #{decoder_decode.1} parent=1 // pred_fallthru
      _
    // Predicated region
    $region66: #{decoder_decode.1} parent=1 // pred_check
      _
    $region67: #{decoder_decode.1} parent=1 // pred_check_branch
      %667 = sbr.rel (0) target = $region69
    $region68: #{decoder_decode.1} parent=1 // pred_region
      %668 = dma.done [#allocation8], 64
    $region69: #{decoder_decode.1} parent=1 // pred_fallthru
      _
    // Predicated region
    $region70: #{decoder_decode.1} parent=1 // pred_check
      _
    $region71: #{decoder_decode.1} parent=1 // pred_check_branch
      %670 = sbr.rel (0) target = $region73
    $region72: #{decoder_decode.1} parent=1 // pred_region
      %671 = dma.done [#allocation8], 64
    $region73: #{decoder_decode.1} parent=1 // pred_fallthru
      _
    %672 = vsyncpa [#allocation6], 1
    %673 = vsyncpa [#allocation8], 1

</llo_original>
